<compile_context>
chip_gen: v6e
topology: v6e:2x2x1
jax: 0.10.0
libtpu: 0.0.40
codegen_flags: <defaults>
</compile_context>

<pallas_src>
import math

import jax
import jax.numpy as jnp
from jax.experimental import pallas as pl
from jax.experimental.pallas import tpu as pltpu


def _ceil_to(x, m):
    return (x + m - 1) // m * m


def _ctc_fc_kernel(x_ref, w_ref, b_ref, o_ref):
    """One (tm, n_pad) output tile of  out = x @ w.T + b.

    x_ref: (tm, K)       VMEM  (caller dtype, e.g. bf16/f32)
    w_ref: (n_pad, K)    VMEM  (native nn.Linear layout, resident across grid)
    b_ref: (1, n_pad)    VMEM  (resident across grid)
    o_ref: (tm, n_pad)   VMEM  (caller dtype)
    """
    acc = jnp.dot(x_ref[...], w_ref[...].T, preferred_element_type=jnp.float32)
    o_ref[...] = (acc + b_ref[...].astype(jnp.float32)).astype(o_ref.dtype)


def ctc_forward(x, weight, bias, *, tm=512):
    """CTC.forward: nn.Linear(in_channels, n_class) applied to the last dim.

    x:      (..., in_channels)
    weight: (n_class, in_channels)   (PyTorch nn.Linear layout, used as-is)
    bias:   (n_class,)
    returns (..., n_class), same dtype as x.
    """
    *lead, K = x.shape
    n_class, k_w = weight.shape
    assert k_w == K, (k_w, K)

    # Flatten all leading dims into one "row" axis (B*T rows). No dtype cast.
    M = int(math.prod(lead)) if lead else 1
    x2 = x.reshape(M, K)

    # Pad only the tiny weight/bias along n_class so the output last dim is a
    # multiple of 128 (lane-dense, unmasked stores). x is NOT padded.
    n_pad = _ceil_to(n_class, 128)
    w = weight
    b = bias[None, :]
    if n_pad != n_class:
        w = jnp.pad(w, ((0, n_pad - n_class), (0, 0)))
        b = jnp.pad(b, ((0, 0), (0, n_pad - n_class)))

    # Row tile: large by default (mem-bound -> long DMAs, few grid steps),
    # clamped to M (sublane multiple of 8).  When everything fits in one tile
    # but M is big enough, split into 2 tiles so both v7x TensorCores work.
    tm_eff = min(tm, _ceil_to(max(M, 8), 8))
    if pl.cdiv(M, tm_eff) < 2 and M >= 16:
        tm_eff = _ceil_to(pl.cdiv(M, 2), 8)
    grid = (pl.cdiv(M, tm_eff),)

    cost = pl.CostEstimate(
        flops=2 * M * K * n_pad,
        transcendentals=0,
        bytes_accessed=(
            x2.dtype.itemsize * M * K
            + w.dtype.itemsize * n_pad * K
            + b.dtype.itemsize * n_pad
            + x.dtype.itemsize * M * n_pad
        ),
    )

    out = pl.pallas_call(
        _ctc_fc_kernel,
        out_shape=jax.ShapeDtypeStruct((M, n_pad), x.dtype),
        grid_spec=pltpu.PrefetchScalarGridSpec(
            num_scalar_prefetch=0,
            grid=grid,
            in_specs=[
                pl.BlockSpec((tm_eff, K), lambda i: (i, 0)),   # x row tile
                pl.BlockSpec((n_pad, K), lambda i: (0, 0)),    # weight, resident
                pl.BlockSpec((1, n_pad), lambda i: (0, 0)),    # bias, resident
            ],
            out_specs=pl.BlockSpec((tm_eff, n_pad), lambda i: (i, 0)),
        ),
        compiler_params=pltpu.CompilerParams(
            dimension_semantics=("parallel",),
        ),
        cost_estimate=cost,
    )(x2, w, b)

    return out[:, :n_class].reshape(*lead, n_class)


def init_ctc_params(key, in_channels, n_class):
    """Deterministic params with nn.Linear-style shapes/init scale."""
    bound = 1.0 / math.sqrt(in_channels)
    kw, kb = jax.random.split(key)
    weight = jax.random.uniform(kw, (n_class, in_channels), jnp.float32, -bound, bound)
    bias = jax.random.uniform(kb, (n_class,), jnp.float32, -bound, bound)
    return weight, bias


if __name__ == "__main__":
    key = jax.random.PRNGKey(0)

    # Small shapes consistent with the OCR recognition pipeline:
    # sequence-encoder output (B, T, in_channels=2*hidden=64) -> n_class logits.
    B, T, in_channels, n_class = 2, 16, 64, 37

    key, kx, kp = jax.random.split(key, 3)
    x = jax.random.normal(kx, (B, T, in_channels), dtype=jnp.float32)
    weight, bias = init_ctc_params(kp, in_channels, n_class)

    out = jax.block_until_ready(ctc_forward(x, weight, bias))

    assert out.shape == (B, T, n_class), out.shape
    assert out.dtype == x.dtype

    ref = x @ weight.T + bias
    max_err = float(jnp.max(jnp.abs(out - ref)))
    assert max_err < 2e-2, f"mismatch vs reference: {max_err}"

    print("KERNEL_OK")
</pallas_src>

<mosaic_0001>
module attributes {stable_mosaic.version = 11 : i64} {
  func.func @_ctc_fc_kernel(%arg0: i32, %arg1: memref<16x64xf32, #tpu.memory_space<vmem>>, %arg2: memref<128x64xf32, #tpu.memory_space<vmem>>, %arg3: memref<1x128xf32, #tpu.memory_space<vmem>>, %arg4: memref<16x128xf32, #tpu.memory_space<vmem>>) attributes {dimension_semantics = [#tpu.dimension_semantics<parallel>], iteration_bounds = array<i64: 2>, scalar_prefetch = 0 : i64, scratch_operands = 0 : i64, tpu.core_type = #tpu.core_type<tc>, window_params = [{transform_indices = @transform_0, window_bounds = array<i64: 16, 64>}, {pipeline_mode = #tpu.pipeline_mode<synchronous>, transform_indices = @transform_1, window_bounds = array<i64: 128, 64>}, {pipeline_mode = #tpu.pipeline_mode<synchronous>, transform_indices = @transform_2, window_bounds = array<i64: 1, 128>}, {transform_indices = @transform_3, window_bounds = array<i64: 16, 128>}]} {
    %c0 = arith.constant 0 : index
    %c0_0 = arith.constant 0 : index
    %0 = vector.load %arg1[%c0, %c0_0] : memref<16x64xf32, #tpu.memory_space<vmem>>, vector<16x64xf32>
    %c0_1 = arith.constant 0 : index
    %c0_2 = arith.constant 0 : index
    %1 = vector.load %arg2[%c0_1, %c0_2] : memref<128x64xf32, #tpu.memory_space<vmem>>, vector<128x64xf32>
    %2 = tpu.transpose %1, [1, 0] : vector<128x64xf32> -> vector<64x128xf32>
    %cst = arith.constant dense<0.000000e+00> : vector<16x128xf32>
    %3 = tpu.matmul %0, %2, %cst {dimension_numbers = #tpu.dot_dimension_numbers<[1], [0], [0], [1], [0, 0, 1, 1], [], []>} : vector<16x64xf32>, vector<64x128xf32>, vector<16x128xf32> -> vector<16x128xf32>
    %c0_3 = arith.constant 0 : index
    %c0_4 = arith.constant 0 : index
    %4 = vector.load %arg3[%c0_3, %c0_4] : memref<1x128xf32, #tpu.memory_space<vmem>>, vector<1x128xf32>
    %5 = vector.broadcast %4 : vector<1x128xf32> to vector<16x128xf32>
    %6 = arith.addf %3, %5 : vector<16x128xf32>
    %c0_5 = arith.constant 0 : index
    %c0_6 = arith.constant 0 : index
    %7 = vector.load %arg4[%c0_5, %c0_6] : memref<16x128xf32, #tpu.memory_space<vmem>>, vector<16x128xf32>
    tpu.vector_store %arg4[%c0_5, %c0_6], %6 {strides = array<i32>} : memref<16x128xf32, #tpu.memory_space<vmem>>, vector<16x128xf32>,
    return
  }
  func.func @transform_0(%arg0: i32) -> (i32, i32) {
    %c0_i32 = arith.constant 0 : i32
    %c0_i32_0 = arith.constant 0 : i32
    return %arg0, %c0_i32 : i32, i32
  }
  func.func @transform_1(%arg0: i32) -> (i32, i32) {
    %c0_i32 = arith.constant 0 : i32
    %c0_i32_0 = arith.constant 0 : i32
    %c0_i32_1 = arith.constant 0 : i32
    return %c0_i32, %c0_i32_0 : i32, i32
  }
  func.func @transform_2(%arg0: i32) -> (i32, i32) {
    %c0_i32 = arith.constant 0 : i32
    %c0_i32_0 = arith.constant 0 : i32
    %c0_i32_1 = arith.constant 0 : i32
    return %c0_i32, %c0_i32_0 : i32, i32
  }
  func.func @transform_3(%arg0: i32) -> (i32, i32) {
    %c0_i32 = arith.constant 0 : i32
    %c0_i32_0 = arith.constant 0 : i32
    return %arg0, %c0_i32 : i32, i32
  }
}

</mosaic_0001>

<llo_original>
// kernel: tpu_custom_call.1
$region0: #{tpu_custom_call.1}
  #allocation0 [shape = 'u32[]', space=smem, size = 0x4, offset = 0x4, fixed_abs, tag = 'smem constant byte address 0x4 - core index']
  #allocation1 [shape = 'u32[144,128]{1,0:T(1,128)}', space=vmem, size = 0x12000, scoped, tag = 'internal scratch']
  %s0 = inlined_call_operand.vmem [shape: f32[32,64], index: 0, kind: input, shape index: {}]
  %s1 = inlined_call_operand.vmem [shape: f32[128,64], index: 1, kind: input, shape index: {}]
  %s2 = inlined_call_operand.vmem [shape: f32[1,128], index: 2, kind: input, shape index: {}]
  %s3 = inlined_call_operand.hbm [shape: f32[32,128], index: 3, kind: output, shape index: {}]
  %s4 = sld [smem:[#allocation0]]
  $region45: #{tpu_custom_call.1} parent=0
    _
  %s6 = ssub.s32 1, %s4
  %s7 = scalar_select 0, %s6, %s4
  $region1: #{tpu_custom_call.1} parent=0
    #allocation2 [shape = 'u8[16384]{0}', space=vmem, size = 0x4000, scoped, tag = 'output window, operand 0']
    #allocation3 [shape = 's32[2]{0}', space=sflag, size = 0x8, scoped, tag = 'scoped memory for tpu_custom_call.1']
    %8 = vsyncpa [#allocation3], 0
    %s9 = scalar_lea.sflag [#allocation3], 1
    %10 = vsyncpa %s9, 0
    loop: start=0, step=1, limit=4
    $region2: #{tpu_custom_call.1} parent=1 // loop_pre_header
      _
    $region3: #{tpu_custom_call.1} parent=1 // loop_header
      %s12 = sphi 0, %s16
      %p13 = scmp.ge.s32.totalorder %s12, 4
      %s22 = sphi 0, %s24
      %s25 = sphi 0, %s22
      %s26 = sphi 0, %s25
      %s42 = sphi 0, %s26
      %s46 = sphi 0, %s46
      %s48 = sphi 0, %s46
      %s49 = sphi 0, %s48
      %s63 = sphi 0, %s49
      %s67 = sphi 0, %s67
      %s69 = sphi 0, %s67
      %s70 = sphi 0, %s69
      %s84 = sphi 0, %s70
      %s90 = sphi 0, %s92
      %s93 = sphi 0, %s90
      %s94 = sphi 0, %s93
      %s110 = sphi 0, %s94
    $region4: #{tpu_custom_call.1} parent=1 // loop_header_branch
      %15 = sbr.rel (%p13) target = $region8
    $region5: #{tpu_custom_call.1} parent=1 // loop_body
      %s17 = ssub.s32 %s12, 1
      %s18 = ssub.s32 %s12, 2
      %s19 = sadd.s32 %s12, 1
      %s20 = ssub.s32 %s12, %s19
      %p21 = scmp.eq.s32.totalorder %s20, 0
      %s23 = sadd.s32 %s22, 1
      %s24 = scalar_select %p21, %s22, %s23
      %p27 = pneg %p21
      %p28 = scmp.eq.s32.totalorder %s12, 1
      %p29 = por %p27, %p28
      %p30 = scmp.ne.s32.totalorder %s22, %s25
      %p31 = scmp.eq.s32.totalorder %s12, 0
      %p32 = por %p30, %p31
      %p33 = scmp.ne.s32.totalorder %s22, %s25
      %p34 = scmp.eq.s32.totalorder %s17, 1
      %p35 = por %p33, %p34
      %p36 = scmp.ne.s32.totalorder %s25, %s26
      %p37 = scmp.eq.s32.totalorder %s17, 0
      %p38 = por %p36, %p37
      %p39 = scmp.ne.s32.totalorder %s25, %s26
      %p40 = scmp.eq.s32.totalorder %s18, 1
      %p41 = por %p39, %p40
      %p43 = scmp.ne.s32.totalorder %s26, %s42
      %p44 = scmp.eq.s32.totalorder %s18, 0
      %p45 = por %p43, %p44
      %s47 = sadd.s32 %s46, 1
      %p50 = scmp.eq.s32.totalorder %s12, 1
      %p51 = scmp.ne.s32.totalorder %s46, %s48
      %p52 = scmp.eq.s32.totalorder %s12, 0
      %p53 = por %p51, %p52
      %p54 = scmp.ne.s32.totalorder %s46, %s48
      %p55 = scmp.eq.s32.totalorder %s17, 1
      %p56 = por %p54, %p55
      %p57 = scmp.ne.s32.totalorder %s48, %s49
      %p58 = scmp.eq.s32.totalorder %s17, 0
      %p59 = por %p57, %p58
      %p60 = scmp.ne.s32.totalorder %s48, %s49
      %p61 = scmp.eq.s32.totalorder %s18, 1
      %p62 = por %p60, %p61
      %p64 = scmp.ne.s32.totalorder %s49, %s63
      %p65 = scmp.eq.s32.totalorder %s18, 0
      %p66 = por %p64, %p65
      %s68 = sadd.s32 %s67, 1
      %p71 = scmp.eq.s32.totalorder %s12, 1
      %p72 = scmp.ne.s32.totalorder %s67, %s69
      %p73 = scmp.eq.s32.totalorder %s12, 0
      %p74 = por %p72, %p73
      %p75 = scmp.ne.s32.totalorder %s67, %s69
      %p76 = scmp.eq.s32.totalorder %s17, 1
      %p77 = por %p75, %p76
      %p78 = scmp.ne.s32.totalorder %s69, %s70
      %p79 = scmp.eq.s32.totalorder %s17, 0
      %p80 = por %p78, %p79
      %p81 = scmp.ne.s32.totalorder %s69, %s70
      %p82 = scmp.eq.s32.totalorder %s18, 1
      %p83 = por %p81, %p82
      %p85 = scmp.ne.s32.totalorder %s70, %s84
      %p86 = scmp.eq.s32.totalorder %s18, 0
      %p87 = por %p85, %p86
      %s88 = ssub.s32 %s12, %s19
      %p89 = scmp.eq.s32.totalorder %s88, 0
      %s91 = sadd.s32 %s90, 1
      %s92 = scalar_select %p89, %s90, %s91
      %p95 = pneg %p89
      %p96 = scmp.eq.s32.totalorder %s12, 1
      %p97 = por %p95, %p96
      %p98 = scmp.ne.s32.totalorder %s90, %s93
      %p99 = scmp.eq.s32.totalorder %s12, 0
      %p100 = por %p98, %p99
      %p101 = scmp.ne.s32.totalorder %s90, %s93
      %p102 = scmp.eq.s32.totalorder %s17, 1
      %p103 = por %p101, %p102
      %p104 = scmp.ne.s32.totalorder %s93, %s94
      %p105 = scmp.eq.s32.totalorder %s17, 0
      %p106 = por %p104, %p105
      %p107 = scmp.ne.s32.totalorder %s93, %s94
      %p108 = scmp.eq.s32.totalorder %s18, 1
      %p109 = por %p107, %p108
      %p111 = scmp.ne.s32.totalorder %s94, %s110
      %p112 = scmp.eq.s32.totalorder %s18, 0
      %p113 = por %p111, %p112
      %p114 = scmp.le.s32.totalorder 1, %s12
      %p115 = scmp.lt.s32.totalorder %s12, 3
      %p116 = pnand %p114, %p115
      %p117 = pneg %p116
      // Predicated region
      $region9: #{tpu_custom_call.1} parent=5 // pred_check
        _
      $region10: #{tpu_custom_call.1} parent=5 // pred_check_branch
        %119 = sbr.rel (%p116) target = $region12
      $region11: #{tpu_custom_call.1} parent=5 // pred_region
        %s120 = ssub.s32 %s12, 1
        // Predicated region
        $region13: #{tpu_custom_call.1} parent=11 // pred_check
          %p121 = pneg %p59
        $region14: #{tpu_custom_call.1} parent=11 // pred_check_branch
          %123 = sbr.rel (%p121) target = $region16
        $region15: #{tpu_custom_call.1} parent=11 // pred_region
          _
        $region16: #{tpu_custom_call.1} parent=11 // pred_fallthru
          _
        // Predicated region
        $region17: #{tpu_custom_call.1} parent=11 // pred_check
          %p124 = pneg %p80
        $region18: #{tpu_custom_call.1} parent=11 // pred_check_branch
          %126 = sbr.rel (%p124) target = $region20
        $region19: #{tpu_custom_call.1} parent=11 // pred_region
          _
        $region20: #{tpu_custom_call.1} parent=11 // pred_fallthru
          _
      $region12: #{tpu_custom_call.1} parent=5 // pred_fallthru
        _
      %p127 = scmp.lt.s32.totalorder %s12, 2
      // Predicated region
      $region21: #{tpu_custom_call.1} parent=5 // pred_check
        %p128 = pneg %p127
      $region22: #{tpu_custom_call.1} parent=5 // pred_check_branch
        %130 = sbr.rel (%p128) target = $region24
      $region23: #{tpu_custom_call.1} parent=5 // pred_region
        // Predicated region
        $region25: #{tpu_custom_call.1} parent=23 // pred_check
          %p131 = pneg %p32
        $region26: #{tpu_custom_call.1} parent=23 // pred_check_branch
          %133 = sbr.rel (%p131) target = $region28
        $region27: #{tpu_custom_call.1} parent=23 // pred_region
          %s134 = smul.u32 2, %s12
          %p135 = scmp.lt.s32.totalorder %s134, 3
          %s136 = scalar_select %p135, %s134, 3
          %s137 = smul.addr %s136, 8
          %s138 = scalar_lea.vmem %s0, %s137
          %s139 = smul.u32 2, %s12
        $region28: #{tpu_custom_call.1} parent=23 // pred_fallthru
          _
      $region24: #{tpu_custom_call.1} parent=5 // pred_fallthru
        _
      %p140 = scmp.le.s32.totalorder 1, %s12
      %p141 = scmp.lt.s32.totalorder %s12, 3
      %p142 = pnand %p140, %p141
      %p143 = pneg %p142
      // Predicated region
      $region29: #{tpu_custom_call.1} parent=5 // pred_check
        _
      $region30: #{tpu_custom_call.1} parent=5 // pred_check_branch
        %145 = sbr.rel (%p142) target = $region32
      $region31: #{tpu_custom_call.1} parent=5 // pred_region
        %s146 = ssub.s32 %s12, 1
        %s147 = smul.u32 2, %s17
        %p148 = scmp.lt.s32.totalorder %s147, 3
        %s149 = scalar_select %p148, %s147, 3
        %s150 = smul.addr %s149, 8
        %s151 = scalar_lea.vmem %s0, %s150
        %p152 = pneg %p38
        %p153 = pneg %p35
        %p154 = pneg %p59
        %p155 = pneg %p56
        %p156 = pneg %p80
        %p157 = pneg %p77
        %p158 = pneg %p106
        %p159 = pneg %p103
        %s160 = sand.u32 %s93, 1
        %s161 = scalar_lea.sflag [#allocation3], %s160
        %s162 = sand.u32 %s93, 1
        %s163 = smul.addr %s162, 16
        %s164 = scalar_lea.vmem [#allocation2], %s163
        %s165 = smul.u32 2, %s17
        %p166 = scmp.lt.s32.totalorder %s165, 3
        %s167 = scalar_select %p166, %s165, 3
        %s168 = smul.addr %s167, 8
        %s169 = scalar_lea.vmem %s0, %s168
        %s170 = smul.u32 2, %s17
        %s171 = smul.u32 2, %s17
        %v172 = vld [vmem:[%s169] sm:$0xff]
        %v173 = vld [vmem:[%s169 + $0x8] sm:$0xff]
        %v174 = vld [vmem:[%s1] sm:$0xff]
        %v175 = vld [vmem:[%s1 + $0x8] sm:$0xff]
        %v176 = vld [vmem:[%s1 + $0x10] sm:$0xff]
        %v177 = vld [vmem:[%s1 + $0x18] sm:$0xff]
        %v178 = vld [vmem:[%s1 + $0x20] sm:$0xff]
        %v179 = vld [vmem:[%s1 + $0x28] sm:$0xff]
        %v180 = vld [vmem:[%s1 + $0x30] sm:$0xff]
        %v181 = vld [vmem:[%s1 + $0x38] sm:$0xff]
        %v182 = vld [vmem:[%s1 + $0x40] sm:$0xff]
        %v183 = vld [vmem:[%s1 + $0x48] sm:$0xff]
        %v184 = vld [vmem:[%s1 + $0x50] sm:$0xff]
        %v185 = vld [vmem:[%s1 + $0x58] sm:$0xff]
        %v186 = vld [vmem:[%s1 + $0x60] sm:$0xff]
        %v187 = vld [vmem:[%s1 + $0x68] sm:$0xff]
        %v188 = vld [vmem:[%s1 + $0x70] sm:$0xff]
        %v189 = vld [vmem:[%s1 + $0x78] sm:$0xff]
        %v190 = vld [vmem:[%s2] sm:$0x1]
        %v192 = vlaneseq
        %v193 = vshrl.u32 %v192, 7
        %v194 = vsub.s32 0, %v193
        %v195 = vrot.slane %v190, %v194
        %vm197 = vcmask 523264
        %v199 = vsel %vm197, %v172, 0
        %v202 = vsel %vm197, %v173, 0
        %v205 = vsel %vm197, %v174, 0
        %v208 = vsel %vm197, %v175, 0
        %v211 = vsel %vm197, %v176, 0
        %v214 = vsel %vm197, %v177, 0
        %v217 = vsel %vm197, %v178, 0
        %v220 = vsel %vm197, %v179, 0
        %v223 = vsel %vm197, %v180, 0
        %v226 = vsel %vm197, %v181, 0
        %v229 = vsel %vm197, %v182, 0
        %v232 = vsel %vm197, %v183, 0
        %v235 = vsel %vm197, %v184, 0
        %v238 = vsel %vm197, %v185, 0
        %v241 = vsel %vm197, %v186, 0
        %v244 = vsel %vm197, %v187, 0
        %v247 = vsel %vm197, %v188, 0
        %v250 = vsel %vm197, %v189, 0
        %252 = vmatprep.subr.mxu0 0.0
        %253 = vmatpush1.xpose.msra.mxu0 %v250
        %254 = vmatprep.subr.mxu0 0.0
        %255 = vmatpush1.xpose.msra.mxu0 %v247
        %256 = vmatprep.subr.mxu0 0.0
        %257 = vmatpush1.xpose.msra.mxu0 %v244
        %258 = vmatprep.subr.mxu0 0.0
        %259 = vmatpush1.xpose.msra.mxu0 %v241
        %260 = vmatprep.subr.mxu0 0.0
        %261 = vmatpush1.xpose.msra.mxu0 %v238
        %262 = vmatprep.subr.mxu0 0.0
        %263 = vmatpush1.xpose.msra.mxu0 %v235
        %264 = vmatprep.subr.mxu0 0.0
        %265 = vmatpush1.xpose.msra.mxu0 %v232
        %266 = vmatprep.subr.mxu0 0.0
        %267 = vmatpush1.xpose.msra.mxu0 %v229
        %268 = vmatprep.subr.mxu0 0.0
        %269 = vmatpush1.xpose.msra.mxu0 %v226
        %270 = vmatprep.subr.mxu0 0.0
        %271 = vmatpush1.xpose.msra.mxu0 %v223
        %272 = vmatprep.subr.mxu0 0.0
        %273 = vmatpush1.xpose.msra.mxu0 %v220
        %274 = vmatprep.subr.mxu0 0.0
        %275 = vmatpush1.xpose.msra.mxu0 %v217
        %276 = vmatprep.subr.mxu0 0.0
        %277 = vmatpush1.xpose.msra.mxu0 %v214
        %278 = vmatprep.subr.mxu0 0.0
        %279 = vmatpush1.xpose.msra.mxu0 %v211
        %280 = vmatprep.subr.mxu0 0.0
        %281 = vmatpush1.xpose.msra.mxu0 %v208
        %282 = vmatprep.subr.mxu0 0.0
        %283 = vmatpush1.xpose.msra.mxu0 %v205
        %284 = vmatprep.subr.mxu0 0.0
        %285 = vmatpush2.xpose.msra.mxu0 0.0
        %286 = vmatprep.subr.mxu0 0.0
        %287 = vmatpush2.xpose.msra.mxu0 0.0
        %288 = vmatprep.subr.mxu0 0.0
        %289 = vmatpush2.xpose.msra.mxu0 0.0
        %290 = vmatprep.subr.mxu0 0.0
        %291 = vmatpush2.xpose.msra.mxu0 0.0
        %292 = vmatprep.subr.mxu0 0.0
        %293 = vmatpush2.xpose.msra.mxu0 0.0
        %294 = vmatprep.subr.mxu0 0.0
        %295 = vmatpush2.xpose.msra.mxu0 0.0
        %296 = vmatprep.subr.mxu0 0.0
        %297 = vmatpush2.xpose.msra.mxu0 0.0
        %298 = vmatprep.subr.mxu0 0.0
        %299 = vmatpush2.xpose.msra.mxu0 0.0
        %300 = vmatprep.subr.mxu0 0.0
        %301 = vmatpush2.xpose.msra.mxu0 0.0
        %302 = vmatprep.subr.mxu0 0.0
        %303 = vmatpush2.xpose.msra.mxu0 0.0
        %304 = vmatprep.subr.mxu0 0.0
        %305 = vmatpush2.xpose.msra.mxu0 0.0
        %306 = vmatprep.subr.mxu0 0.0
        %307 = vmatpush2.xpose.msra.mxu0 0.0
        %308 = vmatprep.subr.mxu0 0.0
        %309 = vmatpush2.xpose.msra.mxu0 0.0
        %310 = vmatprep.subr.mxu0 0.0
        %311 = vmatpush2.xpose.msra.mxu0 0.0
        %312 = vmatprep.subr.mxu0 0.0
        %313 = vmatpush2.xpose.msra.mxu0 0.0
        %314 = vmatprep.subr.mxu0 0.0
        %315 = vmatpush2.xpose.msra.mxu0 0.0
        %316 = vmatprep.mubr.f32.mxu0 0.0
        %317 = vmatmul.mubr.f32.gmra.mxu0 %v199
        %v318 = vpop.f32.mrf.mxu0
        %v319 = vadd.f32 %v195, %v318
        %v320 = vpop.f32.mrf.mxu0
        %321 = vmatprep.mubr.f32.mxu0 0.0
        %322 = vmatmul.mubr.f32.gmra.mxu0 %v202
        %v323 = vpop.f32.mrf.mxu0
        %v324 = vadd.f32 %v195, %v323
        %v325 = vpop.f32.mrf.mxu0
        %326 = vdwg.mxu0
        %327 = vst [vmem:[%s164] sm:$0xff] %v319
        %328 = vst [vmem:[%s164 + $0x8] sm:$0xff] %v324
        %s329 = sand.u32 %s93, 1
        %s330 = scalar_lea.sflag [#allocation3], %s329
        %s331 = sand.u32 %s93, 1
        %s332 = smul.addr %s331, 16
        %s333 = scalar_lea.vmem [#allocation2], %s332
        // Predicated region
        $region33: #{tpu_custom_call.1} parent=31 // pred_check
          %p334 = pneg %p103
        $region34: #{tpu_custom_call.1} parent=31 // pred_check_branch
          %336 = sbr.rel (%p334) target = $region36
        $region35: #{tpu_custom_call.1} parent=31 // pred_region
          %s337 = smul.u32 2, %s17
          %s339 = ssub.s32 256, 256
          %340 = vsyncadd %s330, %s339
          %s341 = smul.addr %s337, 128
          %s342 = scalar_lea.hbm %s3, %s341
          %s343 = sshll.u32 %s333, 4
          %s344 = int_to_ptr.vmem [resolvable:$true] %s343
          %349 = dma.vmem_to_hbm [thread:$0]  %s344, 256, %s342, %s330, 128, 128, 8
        $region36: #{tpu_custom_call.1} parent=31 // pred_fallthru
          _
      $region32: #{tpu_custom_call.1} parent=5 // pred_fallthru
        _
      %p350 = scmp.le.s32.totalorder 2, %s12
      // Predicated region
      $region37: #{tpu_custom_call.1} parent=5 // pred_check
        %p351 = pneg %p350
      $region38: #{tpu_custom_call.1} parent=5 // pred_check_branch
        %353 = sbr.rel (%p351) target = $region40
      $region39: #{tpu_custom_call.1} parent=5 // pred_region
        %s354 = ssub.s32 %s12, 2
        // Predicated region
        $region41: #{tpu_custom_call.1} parent=39 // pred_check
          %p355 = pneg %p109
        $region42: #{tpu_custom_call.1} parent=39 // pred_check_branch
          %357 = sbr.rel (%p355) target = $region44
        $region43: #{tpu_custom_call.1} parent=39 // pred_region
          %s358 = sand.u32 %s94, 1
          %s359 = scalar_lea.sflag [#allocation3], %s358
          %s360 = sand.u32 %s94, 1
          %s361 = smul.addr %s360, 16
          %s362 = scalar_lea.vmem [#allocation2], %s361
          %363 = dma.done %s359, 256
        $region44: #{tpu_custom_call.1} parent=39 // pred_fallthru
          _
      $region40: #{tpu_custom_call.1} parent=5 // pred_fallthru
        _
    $region6: #{tpu_custom_call.1} parent=1 // loop_footer
      %s16 = sadd.s32 1, %s12
    $region7: #{tpu_custom_call.1} parent=1 // loop_footer_branch
      %11 = sbr.rel target = $region3
    $region8: #{tpu_custom_call.1} parent=1 // loop_exit
      _
    %364 = vsyncpa [#allocation3], 1
    %s365 = scalar_lea.sflag [#allocation3], 1
    %366 = vsyncpa %s365, 1

</llo_original>
